<compile_context>
chip_gen: v7x
topology: tpu7x:2x2x1
jax: 0.10.0
libtpu: 0.0.40
codegen_flags: <defaults>
</compile_context>

<pallas_src>
import functools

import jax
import jax.numpy as jnp
from jax import lax
from jax.experimental import pallas as pl
from jax.experimental.pallas import tpu as pltpu


def _zrm_old_kernel(idx_ref, tab_ref, cfeat_ref, rfeat_ref, w_ref, out_ref):
    B, Fc = cfeat_ref.shape
    Fr = rfeat_ref.shape[1]
    F = Fc + Fr
    n_rows, nf_p1 = tab_ref.shape          # n_coils + n_recipes, nf + 1
    nf = nf_p1 - 1
    B2 = idx_ref.shape[0]                  # 2 * B

    # ---- single fused gather of [embedding | bias] rows via one-hot matmul --
    idx = idx_ref[...]                                           # (2B, 1) int32
    iota = lax.broadcasted_iota(jnp.int32, (B2, n_rows), 1)
    onehot = (idx == iota).astype(jnp.float32)                   # (2B, n_rows)
    g = jnp.dot(onehot, tab_ref[...],
                preferred_element_type=jnp.float32)              # (2B, nf+1)

    emb = g[:, :nf]                                              # (2B, nf)
    bias = g[:, nf:nf + 1]                                       # (2B, 1)
    ce = emb[:B]                                                 # (B, nf)  coil
    re = emb[B:]                                                 # (B, nf)  recipe
    cb = bias[:B]                                                # (B, 1)   coil bias (+ lin_b folded in)
    rb = bias[B:]                                                # (B, 1)   recipe bias

    # ---- mean over (a, b) of M[a, b] = ce[a] . re[b]  (no (B,B) matmul) -----
    s_ce = jnp.sum(ce, axis=0, keepdims=True)                    # (1, nf)
    s_re = jnp.sum(re, axis=0, keepdims=True)                    # (1, nf)
    mean_M = jnp.sum(s_ce * s_re) * (1.0 / float(B * B))         # scalar

    # ---- fused Linear + fm:  ex + fm = feats @ (w + mean_M / F)  -----------
    # (the Linear bias scalar is already inside cb via the packed table)
    w_adj = w_ref[...] + mean_M * (1.0 / float(F))               # (1, F)
    wc = w_adj[:, :Fc]                                           # (1, Fc)
    wr = w_adj[:, Fc:]                                           # (1, Fr)

    t = (jnp.sum(cfeat_ref[...] * wc, axis=1, keepdims=True) +
         jnp.sum(rfeat_ref[...] * wr, axis=1, keepdims=True))    # (B, 1)

    # TODO(synk): (B,1) output is lane-sparse; if B grows past a few hundred,
    # emit a lane-dense (1,B) slab or tile to multiples of 128 lanes instead.
    out_ref[...] = cb + rb + t                                   # (B, 1)


def pack_zrm_old_params(params):
    """One-time, hoisted out of the hot path.

    Builds a single stacked [embedding | bias] table of shape
    (n_coils + n_recipes, n_factors + 1) with the Linear bias scalar folded
    into the coil rows' bias column, plus the (1, F) Linear weight row.
    """
    lin_b = params["lin_b"].astype(jnp.float32).reshape(1, 1)
    coil_table = jnp.concatenate(
        [params["coil_emb"].astype(jnp.float32),
         params["coil_bias"].astype(jnp.float32) + lin_b], axis=1)
    recipe_table = jnp.concatenate(
        [params["recipe_emb"].astype(jnp.float32),
         params["recipe_bias"].astype(jnp.float32)], axis=1)
    table = jnp.concatenate([coil_table, recipe_table], axis=0)  # (nc+nr, nf+1)
    w = params["lin_w"].astype(jnp.float32).reshape(1, -1)       # (1, F)
    return {"table": table, "w": w, "n_coils": params["coil_emb"].shape[0]}


@functools.partial(jax.jit, static_argnames=("n_coils",))
def zrm_reccomender_old_forward(coil_indices, recipe_indices,
                                coil_features, recipe_features,
                                table, w, *, n_coils):
    # Packed (2B, 1) index vector: [coil idx ; recipe idx + n_coils]  ->  one
    # gather input instead of two (one fewer prologue DMA descriptor).
    idx = jnp.concatenate(
        [coil_indices.astype(jnp.int32),
         recipe_indices.astype(jnp.int32) + jnp.int32(n_coils)]).reshape(-1, 1)

    cf = coil_features.astype(jnp.float32)                       # (B, Fc)
    rf = recipe_features.astype(jnp.float32)                     # (B, Fr)
    B = cf.shape[0]

    # TODO(synk): at toy catalog sizes the whole packed table fits trivially in
    # VMEM on v5e/v6e/v7x; for large catalogs switch to memory_space=pl.ANY +
    # scalar-prefetch / per-row DMA gather, and add a batch grid
    # (dimension_semantics=("parallel",)) so both v7x TensorCores are used.
    vmem = pl.BlockSpec(memory_space=pltpu.MemorySpace.VMEM)
    out = pl.pallas_call(
        _zrm_old_kernel,
        out_shape=jax.ShapeDtypeStruct((B, 1), jnp.float32),
        in_specs=[
            vmem,                                                # packed idx (2B, 1)
            vmem,                                                # packed table
            vmem,                                                # coil_features
            vmem,                                                # recipe_features
            vmem,                                                # lin_w (1, F)
        ],
        out_specs=vmem,
    )(idx, table, cf, rf, w)
    return out[:, 0]                                             # (B,)


def _reference_forward(coil_indices, recipe_indices,
                       coil_features, recipe_features, params):
    """Pure-JAX mirror of the PyTorch forward (for validation)."""
    ce = params["coil_emb"][coil_indices]
    re = params["recipe_emb"][recipe_indices]
    cb = params["coil_bias"][coil_indices]
    rb = params["recipe_bias"][recipe_indices]
    feats = jnp.concatenate([coil_features, recipe_features], axis=1)
    M = jnp.matmul(re, ce.T).T                               # (B, B)
    pw = M[None, None, :, :] * feats[:, :, None, None]       # (B, F, B, B)
    fm = pw.mean(axis=(1, 2, 3))                             # (B,)
    ex = feats @ params["lin_w"].T + params["lin_b"]         # (B, 1)
    return cb[:, 0] + rb[:, 0] + ex[:, 0] + fm


if __name__ == "__main__":
    # Module hyperparameters (small, consistent with the forward pass)
    NR_COILS = 32
    NR_RECIPES = 24
    NR_COIL_FEATURES = 6
    NR_RECIPE_FEATURES = 5
    N_FACTORS = 10
    B = 8

    key = jax.random.PRNGKey(0)
    ks = jax.random.split(key, 10)

    F_TOTAL = NR_COIL_FEATURES + NR_RECIPE_FEATURES
    params = {
        "coil_emb":    jax.random.normal(ks[0], (NR_COILS, N_FACTORS), jnp.float32),
        "recipe_emb":  jax.random.normal(ks[1], (NR_RECIPES, N_FACTORS), jnp.float32),
        "coil_bias":   jax.random.normal(ks[2], (NR_COILS, 1), jnp.float32),
        "recipe_bias": jax.random.normal(ks[3], (NR_RECIPES, 1), jnp.float32),
        "lin_w":       jax.random.normal(ks[4], (1, F_TOTAL), jnp.float32) * 0.1,
        "lin_b":       jax.random.normal(ks[5], (1,), jnp.float32) * 0.1,
        # TODO(synk): self.linear2 / relu / dropout are defined in __init__ but
        # unused in forward; not instantiated here.
    }

    coil_indices = jax.random.randint(ks[6], (B,), 0, NR_COILS)
    recipe_indices = jax.random.randint(ks[7], (B,), 0, NR_RECIPES)
    coil_features = jax.random.normal(ks[8], (B, NR_COIL_FEATURES), jnp.float32)
    recipe_features = jax.random.normal(ks[9], (B, NR_RECIPE_FEATURES), jnp.float32)

    # One-time param packing (hoisted out of the per-call hot path).
    packed = pack_zrm_old_params(params)
    packed = jax.tree_util.tree_map(
        lambda x: jax.block_until_ready(x) if isinstance(x, jax.Array) else x,
        packed)

    pred = zrm_reccomender_old_forward(
        coil_indices, recipe_indices, coil_features, recipe_features,
        packed["table"], packed["w"], n_coils=packed["n_coils"])
    pred = jax.block_until_ready(pred)

    ref = _reference_forward(coil_indices, recipe_indices,
                             coil_features, recipe_features, params)
    assert pred.shape == (B,)
    assert jnp.allclose(pred, ref, atol=1e-4, rtol=1e-4), (pred, ref)

    print("KERNEL_OK")
</pallas_src>

<mosaic_0001>
module attributes {stable_mosaic.version = 11 : i64} {
  func.func @_zrm_old_kernel(%arg0: memref<16x1xi32, #tpu.memory_space<vmem>>, %arg1: memref<56x11xf32, #tpu.memory_space<vmem>>, %arg2: memref<8x6xf32, #tpu.memory_space<vmem>>, %arg3: memref<8x5xf32, #tpu.memory_space<vmem>>, %arg4: memref<1x11xf32, #tpu.memory_space<vmem>>, %arg5: memref<8x1xf32, #tpu.memory_space<vmem>>) attributes {dimension_semantics = [], scalar_prefetch = 0 : i64, scratch_operands = 0 : i64, tpu.core_type = #tpu.core_type<tc>} {
    %c0 = arith.constant 0 : index
    %c0_0 = arith.constant 0 : index
    %0 = vector.load %arg0[%c0, %c0_0] : memref<16x1xi32, #tpu.memory_space<vmem>>, vector<16x1xi32>
    %1 = tpu.iota {dimensions = array<i32: 1>} : vector<16x56xi32>
    %2 = vector.broadcast %0 : vector<16x1xi32> to vector<16x56xi32>
    %3 = arith.cmpi eq, %2, %1 : vector<16x56xi32>
    %4 = arith.extui %3 : vector<16x56xi1> to vector<16x56xi32>
    %5 = arith.sitofp %4 : vector<16x56xi32> to vector<16x56xf32>
    %c0_1 = arith.constant 0 : index
    %c0_2 = arith.constant 0 : index
    %6 = vector.load %arg1[%c0_1, %c0_2] : memref<56x11xf32, #tpu.memory_space<vmem>>, vector<56x11xf32>
    %cst = arith.constant dense<0.000000e+00> : vector<16x11xf32>
    %7 = tpu.matmul %5, %6, %cst {dimension_numbers = #tpu.dot_dimension_numbers<[1], [0], [0], [1], [0, 0, 1, 1], [], []>} : vector<16x56xf32>, vector<56x11xf32>, vector<16x11xf32> -> vector<16x11xf32>
    %8 = vector.extract_strided_slice %7 {offsets = [0, 0], sizes = [16, 10], strides = [1, 1]} : vector<16x11xf32> to vector<16x10xf32>
    %9 = vector.extract_strided_slice %7 {offsets = [0, 10], sizes = [16, 1], strides = [1, 1]} : vector<16x11xf32> to vector<16x1xf32>
    %10 = vector.extract_strided_slice %8 {offsets = [0, 0], sizes = [8, 10], strides = [1, 1]} : vector<16x10xf32> to vector<8x10xf32>
    %11 = vector.extract_strided_slice %8 {offsets = [8, 0], sizes = [8, 10], strides = [1, 1]} : vector<16x10xf32> to vector<8x10xf32>
    %12 = vector.extract_strided_slice %9 {offsets = [0, 0], sizes = [8, 1], strides = [1, 1]} : vector<16x1xf32> to vector<8x1xf32>
    %13 = vector.extract_strided_slice %9 {offsets = [8, 0], sizes = [8, 1], strides = [1, 1]} : vector<16x1xf32> to vector<8x1xf32>
    %cst_3 = arith.constant dense<0.000000e+00> : vector<10xf32>
    %14 = vector.multi_reduction <add>, %10, %cst_3 [0] : vector<8x10xf32> to vector<10xf32>
    %15 = vector.shape_cast %14 : vector<10xf32> to vector<1x10xf32>
    %cst_4 = arith.constant dense<0.000000e+00> : vector<10xf32>
    %16 = vector.multi_reduction <add>, %11, %cst_4 [0] : vector<8x10xf32> to vector<10xf32>
    %17 = vector.shape_cast %16 : vector<10xf32> to vector<1x10xf32>
    %18 = arith.mulf %15, %17 : vector<1x10xf32>
    %19 = vector.shape_cast %18 : vector<1x10xf32> to vector<1x1x10xf32>
    %cst_5 = arith.constant dense<0.000000e+00> : vector<1xf32>
    %20 = vector.multi_reduction <add>, %19, %cst_5 [1, 2] : vector<1x1x10xf32> to vector<1xf32>
    %21 = vector.shape_cast %20 : vector<1xf32> to vector<1x1x1xf32>
    %22 = vector.extract %21[0, 0, 0] : f32 from vector<1x1x1xf32>
    %cst_6 = arith.constant 1.562500e-02 : f32
    %23 = arith.mulf %22, %cst_6 : f32
    %c0_7 = arith.constant 0 : index
    %c0_8 = arith.constant 0 : index
    %24 = vector.load %arg4[%c0_7, %c0_8] : memref<1x11xf32, #tpu.memory_space<vmem>>, vector<1x11xf32>
    %cst_9 = arith.constant 0.0909090936 : f32
    %25 = arith.mulf %23, %cst_9 : f32
    %26 = vector.broadcast %25 : f32 to vector<1x11xf32>
    %27 = arith.addf %24, %26 : vector<1x11xf32>
    %28 = vector.extract_strided_slice %27 {offsets = [0, 0], sizes = [1, 6], strides = [1, 1]} : vector<1x11xf32> to vector<1x6xf32>
    %29 = vector.extract_strided_slice %27 {offsets = [0, 6], sizes = [1, 5], strides = [1, 1]} : vector<1x11xf32> to vector<1x5xf32>
    %c0_10 = arith.constant 0 : index
    %c0_11 = arith.constant 0 : index
    %30 = vector.load %arg2[%c0_10, %c0_11] : memref<8x6xf32, #tpu.memory_space<vmem>>, vector<8x6xf32>
    %31 = vector.broadcast %28 : vector<1x6xf32> to vector<8x6xf32>
    %32 = arith.mulf %30, %31 : vector<8x6xf32>
    %cst_12 = arith.constant dense<0.000000e+00> : vector<8xf32>
    %33 = vector.multi_reduction <add>, %32, %cst_12 [1] : vector<8x6xf32> to vector<8xf32>
    %34 = vector.shape_cast %33 : vector<8xf32> to vector<8x1xf32>
    %c0_13 = arith.constant 0 : index
    %c0_14 = arith.constant 0 : index
    %35 = vector.load %arg3[%c0_13, %c0_14] : memref<8x5xf32, #tpu.memory_space<vmem>>, vector<8x5xf32>
    %36 = vector.broadcast %29 : vector<1x5xf32> to vector<8x5xf32>
    %37 = arith.mulf %35, %36 : vector<8x5xf32>
    %cst_15 = arith.constant dense<0.000000e+00> : vector<8xf32>
    %38 = vector.multi_reduction <add>, %37, %cst_15 [1] : vector<8x5xf32> to vector<8xf32>
    %39 = vector.shape_cast %38 : vector<8xf32> to vector<8x1xf32>
    %40 = arith.addf %34, %39 : vector<8x1xf32>
    %41 = arith.addf %12, %13 : vector<8x1xf32>
    %42 = arith.addf %41, %40 : vector<8x1xf32>
    %c0_16 = arith.constant 0 : index
    %c0_17 = arith.constant 0 : index
    %43 = vector.load %arg5[%c0_16, %c0_17] : memref<8x1xf32, #tpu.memory_space<vmem>>, vector<8x1xf32>
    tpu.vector_store %arg5[%c0_16, %c0_17], %42 {strides = array<i32>} : memref<8x1xf32, #tpu.memory_space<vmem>>, vector<8x1xf32>,
    return
  }
}

</mosaic_0001>

<llo_original>
// kernel: zrm_reccomender_old_forward.1
$region0: #{zrm_reccomender_old_forward.1}
  #allocation0 [shape = 'u32[]', space=smem, size = 0x4, offset = 0x4, fixed_abs, tag = 'smem constant byte address 0x4 - core index']
  #allocation1 [shape = 'u32[144,128]{1,0:T(1,128)}', space=vmem, size = 0x12000, scoped, tag = 'internal scratch']
  %s0 = inlined_call_operand.vmem [shape: s32[16,1], index: 0, kind: input, shape index: {}]
  %s1 = inlined_call_operand.vmem [shape: f32[56,11], index: 1, kind: input, shape index: {}]
  %s2 = inlined_call_operand.vmem [shape: f32[8,6], index: 2, kind: input, shape index: {}]
  %s3 = inlined_call_operand.vmem [shape: f32[8,5], index: 3, kind: input, shape index: {}]
  %s4 = inlined_call_operand.vmem [shape: f32[1,11], index: 4, kind: input, shape index: {}]
  %s5 = inlined_call_operand.vmem [shape: f32[8,1], index: 5, kind: output, shape index: {}]
  %s6 = sld [smem:[#allocation0]]
  $region30: #{zrm_reccomender_old_forward.1} parent=0
    _
  %s8 = ssub.s32 1, %s6
  %s9 = scalar_select 0, %s8, %s6
  // Predicated region
  $region2: #{zrm_reccomender_old_forward.1} parent=0 // pred_check
    _
  $region3: #{zrm_reccomender_old_forward.1} parent=0 // pred_check_branch
    %11 = sbr.rel (0) target = $region5
  $region4: #{zrm_reccomender_old_forward.1} parent=0 // pred_region
    _
  $region5: #{zrm_reccomender_old_forward.1} parent=0 // pred_fallthru
    _
  // Predicated region
  $region6: #{zrm_reccomender_old_forward.1} parent=0 // pred_check
    _
  $region7: #{zrm_reccomender_old_forward.1} parent=0 // pred_check_branch
    %13 = sbr.rel (0) target = $region9
  $region8: #{zrm_reccomender_old_forward.1} parent=0 // pred_region
    _
  $region9: #{zrm_reccomender_old_forward.1} parent=0 // pred_fallthru
    _
  // Predicated region
  $region10: #{zrm_reccomender_old_forward.1} parent=0 // pred_check
    _
  $region11: #{zrm_reccomender_old_forward.1} parent=0 // pred_check_branch
    %15 = sbr.rel (0) target = $region13
  $region12: #{zrm_reccomender_old_forward.1} parent=0 // pred_region
    _
  $region13: #{zrm_reccomender_old_forward.1} parent=0 // pred_fallthru
    _
  // Predicated region
  $region14: #{zrm_reccomender_old_forward.1} parent=0 // pred_check
    _
  $region15: #{zrm_reccomender_old_forward.1} parent=0 // pred_check_branch
    %17 = sbr.rel (0) target = $region17
  $region16: #{zrm_reccomender_old_forward.1} parent=0 // pred_region
    _
  $region17: #{zrm_reccomender_old_forward.1} parent=0 // pred_fallthru
    _
  // Predicated region
  $region18: #{zrm_reccomender_old_forward.1} parent=0 // pred_check
    _
  $region19: #{zrm_reccomender_old_forward.1} parent=0 // pred_check_branch
    %19 = sbr.rel (0) target = $region21
  $region20: #{zrm_reccomender_old_forward.1} parent=0 // pred_region
    _
  $region21: #{zrm_reccomender_old_forward.1} parent=0 // pred_fallthru
    _
  %v20 = vld [vmem:[%s0] sm:$0xff]
  %v21 = vld [vmem:[%s0 + $0x8] sm:$0xff]
  %v22 = vlaneseq
  %v23 = vand.u32 %v22, 127
  %24 = vset.pattern.permute.xlu0 0
  %25 = vperm.xlu0 %24, %v20
  %v26 = vpop.permute.xlu0 %25
  %27 = vset.pattern.permute.xlu0 0
  %28 = vperm.xlu0 %27, %v21
  %v29 = vpop.permute.xlu0 %28
  %vm30 = vcmp.eq.s32.totalorder %v26, %v23
  %vm31 = vcmp.eq.s32.totalorder %v29, %v23
  %v32 = vsel %vm30, 1, 0
  %v33 = vsel %vm31, 1, 0
  %v34 = vcvt.s32.f32 %v32
  %v35 = vcvt.s32.f32 %v33
  %v36 = vld [vmem:[%s1] sm:$0xff]
  %v37 = vld [vmem:[%s1 + $0x8] sm:$0xff]
  %v38 = vld [vmem:[%s1 + $0x10] sm:$0xff]
  %v39 = vld [vmem:[%s1 + $0x18] sm:$0xff]
  %v40 = vld [vmem:[%s1 + $0x20] sm:$0xff]
  %v41 = vld [vmem:[%s1 + $0x28] sm:$0xff]
  %v42 = vld [vmem:[%s1 + $0x30] sm:$0xff]
  %vm43 = vcmask 457728
  %v45 = vsel %vm43, %v34, 0
  %v48 = vsel %vm43, %v35, 0
  %50 = vmatprep.subr.mxu0 0.0
  %51 = vmatpush1.msra.mxu0 %v36
  %52 = vmatprep.subr.mxu0 0.0
  %53 = vmatpush1.msra.mxu0 %v37
  %54 = vmatprep.subr.mxu0 0.0
  %55 = vmatpush1.msra.mxu0 %v38
  %56 = vmatprep.subr.mxu0 0.0
  %57 = vmatpush1.msra.mxu0 %v39
  %58 = vmatprep.subr.mxu0 0.0
  %59 = vmatpush1.msra.mxu0 %v40
  %60 = vmatprep.subr.mxu0 0.0
  %61 = vmatpush1.msra.mxu0 %v41
  %62 = vmatprep.subr.mxu0 0.0
  %63 = vmatpush1.msra.mxu0 %v42
  %64 = vmatprep.subr.mxu0 0.0
  %65 = vmatpush1.msra.mxu0 0.0
  %66 = vmatprep.subr.mxu0 0.0
  %67 = vmatpush1.msra.mxu0 0.0
  %68 = vmatprep.subr.mxu0 0.0
  %69 = vmatpush1.msra.mxu0 0.0
  %70 = vmatprep.subr.mxu0 0.0
  %71 = vmatpush1.msra.mxu0 0.0
  %72 = vmatprep.subr.mxu0 0.0
  %73 = vmatpush1.msra.mxu0 0.0
  %74 = vmatprep.subr.mxu0 0.0
  %75 = vmatpush1.msra.mxu0 0.0
  %76 = vmatprep.subr.mxu0 0.0
  %77 = vmatpush1.msra.mxu0 0.0
  %78 = vmatprep.subr.mxu0 0.0
  %79 = vmatpush1.msra.mxu0 0.0
  %80 = vmatprep.subr.mxu0 0.0
  %81 = vmatpush1.msra.mxu0 0.0
  %82 = vmatprep.subr.mxu0 0.0
  %83 = vmatpush1.msra.mxu0 0.0
  %84 = vmatprep.subr.mxu0 0.0
  %85 = vmatpush1.msra.mxu0 0.0
  %86 = vmatprep.subr.mxu0 0.0
  %87 = vmatpush1.msra.mxu0 0.0
  %88 = vmatprep.subr.mxu0 0.0
  %89 = vmatpush1.msra.mxu0 0.0
  %90 = vmatprep.subr.mxu0 0.0
  %91 = vmatpush1.msra.mxu0 0.0
  %92 = vmatprep.subr.mxu0 0.0
  %93 = vmatpush1.msra.mxu0 0.0
  %94 = vmatprep.subr.mxu0 0.0
  %95 = vmatpush1.msra.mxu0 0.0
  %96 = vmatprep.subr.mxu0 0.0
  %97 = vmatpush1.msra.mxu0 0.0
  %98 = vmatprep.subr.mxu0 0.0
  %99 = vmatpush1.msra.mxu0 0.0
  %100 = vmatprep.subr.mxu0 0.0
  %101 = vmatpush1.msra.mxu0 0.0
  %102 = vmatprep.subr.mxu0 0.0
  %103 = vmatpush1.msra.mxu0 0.0
  %104 = vmatprep.subr.mxu0 0.0
  %105 = vmatpush1.msra.mxu0 0.0
  %106 = vmatprep.subr.mxu0 0.0
  %107 = vmatpush1.msra.mxu0 0.0
  %108 = vmatprep.subr.mxu0 0.0
  %109 = vmatpush1.msra.mxu0 0.0
  %110 = vmatprep.subr.mxu0 0.0
  %111 = vmatpush1.msra.mxu0 0.0
  %112 = vmatprep.subr.mxu0 0.0
  %113 = vmatpush1.msra.mxu0 0.0
  %114 = vmatprep.mubr.f32.mxu0 0.0
  %115 = vmatmul.mubr.f32.gmra.mrb[0].mxu0 %v45
  %v116 = vpop.f32.mrb[0].mxu0
  %v117 = vadd.f32 0.0, %v116
  %v118 = vpop.f32.mrb[0].mxu0
  %119 = vmatprep.mubr.f32.mxu0 0.0
  %120 = vmatmul.mubr.f32.gmra.mrb[0].mxu0 %v48
  %v121 = vpop.f32.mrb[0].mxu0
  %v122 = vadd.f32 0.0, %v121
  %v123 = vpop.f32.mrb[0].mxu0
  %124 = vdwg.mxu0
  %vm125 = vcmask 80896
  %v126 = vsel %vm125, %v117, 0.0
  %v127 = vrot.slane %v126, 4
  %v128 = vadd.f32 %v126, %v127
  %v129 = vrot.slane %v128, 2
  %v130 = vadd.f32 %v128, %v129
  %v131 = vrot.slane %v130, 1
  %v132 = vadd.f32 %v130, %v131
  %v133 = vsel %vm125, %v122, 0.0
  %v134 = vrot.slane %v133, 4
  %v135 = vadd.f32 %v133, %v134
  %v136 = vrot.slane %v135, 2
  %v137 = vadd.f32 %v135, %v136
  %v138 = vrot.slane %v137, 1
  %v139 = vadd.f32 %v137, %v138
  %v140 = vmul.f32 %v132, %v139
  %vm141 = vcmask 73728
  %v142 = vsel %vm141, %v140, 0.0
  %143 = vadd.xlane.f32.xlu0 %v142
  %v144 = vpop.xlane.xlu0 %143
  %v145 = vrot.slane %v144, 4
  %v146 = vadd.f32 %v144, %v145
  %v147 = vrot.slane %v146, 2
  %v148 = vadd.f32 %v146, %v147
  %v149 = vrot.slane %v148, 1
  %v150 = vadd.f32 %v148, %v149
  %s151 = vtos %v150
  %s152 = smul.f32 %s151, 0.015625
  %v153 = vld [vmem:[%s4] sm:$0x1]
  %s154 = smul.f32 %s152, 0.09090909
  %v155 = vstv %s154
  %v156 = vadd.f32 %v153, %v155
  %v157 = vld [vmem:[%s2] sm:$0xff]
  %v159 = vlaneseq
  %v160 = vshrl.u32 %v159, 7
  %v161 = vsub.s32 0, %v160
  %v162 = vrot.slane %v156, %v161
  %v164 = vmul.f32 %v157, %v162
  %vm165 = vcmask 48128
  %v166 = vsel %vm165, %v164, 0.0
  %167 = vadd.xlane.f32.xlu0 %v166
  %v168 = vpop.xlane.xlu0 %167
  %v169 = vld [vmem:[%s3] sm:$0xff]
  %170 = vrot.lane.b32.xlu0 %v162, 122
  %v171 = vpop.permute.xlu0 %170
  %v173 = vmul.f32 %v169, %v171
  %vm174 = vcmask 39936
  %v175 = vsel %vm174, %v173, 0.0
  %176 = vadd.xlane.f32.xlu0 %v175
  %v177 = vpop.xlane.xlu0 %176
  %v178 = vadd.f32 %v168, %v177
  %v179 = vadd.f32 %v117, %v122
  %v180 = vadd.f32 %v179, %v178
  %182 = vrot.lane.b32.xlu0 %v180, 118
  %v183 = vpop.permute.xlu0 %182
  %vm185 = vcmask 7168
  %186 = vst.msk [vmem:[%s5] sm:$0xff] %vm185, %v183
  // Predicated region
  $region22: #{zrm_reccomender_old_forward.1} parent=0 // pred_check
    _
  $region23: #{zrm_reccomender_old_forward.1} parent=0 // pred_check_branch
    %188 = sbr.rel (0) target = $region25
  $region24: #{zrm_reccomender_old_forward.1} parent=0 // pred_region
    _
  $region25: #{zrm_reccomender_old_forward.1} parent=0 // pred_fallthru
    _
  // Predicated region
  $region26: #{zrm_reccomender_old_forward.1} parent=0 // pred_check
    _
  $region27: #{zrm_reccomender_old_forward.1} parent=0 // pred_check_branch
    %190 = sbr.rel (0) target = $region29
  $region28: #{zrm_reccomender_old_forward.1} parent=0 // pred_region
    _
  $region29: #{zrm_reccomender_old_forward.1} parent=0 // pred_fallthru
    _

</llo_original>
